<compile_context>
chip_gen: v7x
topology: tpu7x:2x2x1
jax: 0.10.0
libtpu: 0.0.40
codegen_flags: <defaults>
</compile_context>

<pallas_src>
import functools

import jax
import jax.numpy as jnp
from jax import lax
from jax.experimental import pallas as pl
from jax.experimental.pallas import tpu as pltpu

_LANES = 128
_SUBLANES = 8


def _vmem_limit_bytes():
    """Scoped-VMEM request: ~3/4 of physical VMEM, capped at 64 MiB (v7x: 48 MiB)."""
    try:
        cap = int(pltpu.get_tpu_info().vmem_capacity_bytes)
        return min(64 * 1024 * 1024, (cap * 3) // 4)
    except Exception:
        return 48 * 1024 * 1024          # safe on every generation


def _bce_dice_kernel(p_ref, t_ref, out_ref,
                     bce_acc, inter_acc, psum_acc, tsum_acc, *,
                     tile_rows, chunk_rows, steps_per_core,
                     rows_valid, needs_mask, binary_targets):
    k = pl.program_id(1)                  # reduction step within this core
    B = p_ref.shape[0]

    @pl.when(k == 0)
    def _init():
        bce_acc[...] = jnp.zeros_like(bce_acc)
        inter_acc[...] = jnp.zeros_like(inter_acc)
        psum_acc[...] = jnp.zeros_like(psum_acc)
        tsum_acc[...] = jnp.zeros_like(tsum_acc)

    if needs_mask:
        # Logical global row offset of this tile (core split is program_id(0)).
        tile_row0 = (pl.program_id(0) * steps_per_core + k) * tile_rows

    # Single pass over the tile: a static (fully unrolled) chunk loop bounds the
    # in-kernel f32 temporaries while all four partial sums reuse the same vregs.
    n_chunks = pl.cdiv(tile_rows, chunk_rows)
    for g in range(n_chunks):
        r0 = g * chunk_rows
        size = min(chunk_rows, tile_rows - r0)     # last chunk may be smaller
        groups = size // _SUBLANES
        p = p_ref[:, pl.ds(r0, size), :].astype(jnp.float32)
        t = t_ref[:, pl.ds(r0, size), :].astype(jnp.float32)

        if needs_mask:
            # Rows at/after `rows_valid` are out-of-bounds (ragged tail tile or a
            # duplicated tile of an uneven core split): zero them before any math
            # so garbage never reaches log() and every sum stays exact.
            rid = tile_row0 + r0 + lax.broadcasted_iota(jnp.int32, p.shape, 1)
            valid = rid < rows_valid
            p = jnp.where(valid, p, 0.0)
            t = jnp.where(valid, t, 0.0)

        # nn.BCELoss semantics: log terms clamped at -100; clamp is applied before
        # multiplying by t so 0 * (-inf) never appears; final negation folded in.
        if binary_targets:
            # Single-log path (exact only for hard {0,1} targets).
            bce = -jnp.maximum(jnp.log(jnp.where(t != 0.0, p, 1.0 - p)), -100.0)
        else:
            log_p = jnp.maximum(jnp.log(p), -100.0)
            log_1mp = jnp.maximum(jnp.log(1.0 - p), -100.0)
            bce = t * (log_1mp - log_p) - log_1mp   # == -(t·log p + (1-t)·log(1-p))

        bce_acc[...] += jnp.sum(bce.reshape(B, groups, _SUBLANES, _LANES), axis=1)
        inter_acc[...] += jnp.sum((p * t).reshape(B, groups, _SUBLANES, _LANES), axis=1)
        psum_acc[...] += jnp.sum(p.reshape(B, groups, _SUBLANES, _LANES), axis=1)
        tsum_acc[...] += jnp.sum(t.reshape(B, groups, _SUBLANES, _LANES), axis=1)

    @pl.when(k == pl.num_programs(1) - 1)
    def _finalize():
        # One lane-dense partial block per core; cross-lane reduce happens in JAX.
        out_ref[0, 0] = bce_acc[...].reshape(B * _SUBLANES, _LANES)
        out_ref[0, 1] = inter_acc[...].reshape(B * _SUBLANES, _LANES)
        out_ref[0, 2] = psum_acc[...].reshape(B * _SUBLANES, _LANES)
        out_ref[0, 3] = tsum_acc[...].reshape(B * _SUBLANES, _LANES)


def bce_dice_loss(pred, target, *, smooth=1.0, binary_targets=False,
                  target_block_bytes=4 * 1024 * 1024):
    """pred, target: NCHW (or any) arrays with pred in [0, 1]. Returns scalar loss."""
    if isinstance(pred, tuple):
        pred = pred[0]
    B = pred.shape[0]
    p = pred.reshape(B, -1)                        # native dtype; cast in-kernel
    t = target.reshape(target.shape[0], -1)
    assert p.shape == t.shape, (p.shape, t.shape)
    N = p.shape[1]                                 # true per-sample element count

    # Only pad when the flattened sample length is not (8*128)-aligned; the pad is
    # <1024 elements/sample and exact (zeros contribute 0 to BCE and Dice sums).
    # TODO(synk): a fully pad-free path for unaligned N needs an element-level tail
    # mask on a 2-D layout; kept as a rare small pad for simplicity.
    align = _SUBLANES * _LANES
    if N % align != 0:
        n_pad = pl.cdiv(N, align) * align
        p = jnp.pad(p, ((0, 0), (0, n_pad - N)))
        t = jnp.pad(t, ((0, 0), (0, n_pad - N)))
    rows = p.shape[1] // _LANES                    # multiple of 8
    p3 = p.reshape(B, rows, _LANES)                # zero-copy reshapes
    t3 = t.reshape(B, rows, _LANES)

    # ---- Tile sizing from the VMEM budget (target ~4 MiB per input block) ----
    vmem_limit = _vmem_limit_bytes()
    in_bytes_per_row = B * _LANES * (p3.dtype.itemsize + t3.dtype.itemsize)
    budget_rows = target_block_bytes // (B * _LANES * p3.dtype.itemsize)
    cap_rows = (vmem_limit // 2) // (2 * in_bytes_per_row)   # 2x-buffered inputs <= half
    tile_rows = max(_SUBLANES, min(budget_rows, cap_rows, rows))
    tile_rows = (tile_rows // _SUBLANES) * _SUBLANES

    # ---- Core split: use both TensorCores (v7x) when there is enough work ----
    real_tiles = pl.cdiv(rows, tile_rows)
    num_splits = 2 if real_tiles >= 2 else 1
    steps_per_core = pl.cdiv(real_tiles, num_splits)
    if num_splits > 1:
        # Shrink the tile so (num_splits * steps_per_core) tiles cover `rows` with
        # minimal overshoot instead of re-reading a whole duplicated tile.
        even = num_splits * steps_per_core
        tile_rows = min(tile_rows, pl.cdiv(pl.cdiv(rows, even), _SUBLANES) * _SUBLANES)
        real_tiles = pl.cdiv(rows, tile_rows)
        steps_per_core = pl.cdiv(real_tiles, num_splits)
    total_tiles = num_splits * steps_per_core
    needs_mask = total_tiles * tile_rows > rows

    # ---- Inner chunking: bound in-kernel f32 temporaries to ~1 MiB per chunk ----
    chunk_cap_rows = max(_SUBLANES,
                         ((1 << 20) // (B * _LANES * 4)) // _SUBLANES * _SUBLANES)
    chunk_rows = min(tile_rows, chunk_cap_rows)

    kernel = functools.partial(
        _bce_dice_kernel,
        tile_rows=tile_rows, chunk_rows=chunk_rows,
        steps_per_core=steps_per_core, rows_valid=rows,
        needs_mask=needs_mask, binary_targets=binary_targets)

    if total_tiles > real_tiles:
        # Clamp duplicated tiles of an uneven split onto the last real block
        # (they are fully masked out in-kernel, so no double counting).
        def in_index(c, k):
            return (0, jnp.minimum(c * steps_per_core + k, real_tiles - 1), 0)
    else:
        def in_index(c, k):
            return (0, c * steps_per_core + k, 0)

    out = pl.pallas_call(
        kernel,
        out_shape=jax.ShapeDtypeStruct(
            (num_splits, 4, B * _SUBLANES, _LANES), jnp.float32),
        grid_spec=pltpu.PrefetchScalarGridSpec(
            num_scalar_prefetch=0,
            grid=(num_splits, steps_per_core),
            in_specs=[
                pl.BlockSpec((B, tile_rows, _LANES), in_index),
                pl.BlockSpec((B, tile_rows, _LANES), in_index),
            ],
            out_specs=pl.BlockSpec((1, 4, B * _SUBLANES, _LANES),
                                   lambda c, k: (c, 0, 0, 0)),
            scratch_shapes=[
                pltpu.VMEM((B, _SUBLANES, _LANES), jnp.float32),   # bce partial
                pltpu.VMEM((B, _SUBLANES, _LANES), jnp.float32),   # intersection
                pltpu.VMEM((B, _SUBLANES, _LANES), jnp.float32),   # pred sum
                pltpu.VMEM((B, _SUBLANES, _LANES), jnp.float32),   # target sum
            ],
        ),
        compiler_params=pltpu.CompilerParams(
            dimension_semantics=("parallel", "arbitrary"),
            vmem_limit_bytes=vmem_limit,
        ),
    )(p3, t3)

    # Tiny per-core partial combine + final scalar math (O(B) work) in XLA.
    sums = out.reshape(num_splits, 4, B, _SUBLANES * _LANES).sum(axis=(0, 3))  # (4, B)
    bce_loss = jnp.sum(sums[0]) / float(B * N)
    inter, p_sum, t_sum = sums[1], sums[2], sums[3]
    dice_score = (2.0 * inter + smooth) / (p_sum + t_sum + smooth)
    dice_loss = 1.0 - jnp.mean(dice_score)
    return bce_loss + dice_loss


def _reference(pred, target):
    # Pure-JAX reference (matches PyTorch BceDiceLoss with weight=None, mean BCE).
    B = pred.shape[0]
    p = pred.reshape(B, -1).astype(jnp.float32)
    t = target.reshape(B, -1).astype(jnp.float32)
    bce = jnp.mean(-(t * jnp.maximum(jnp.log(p), -100.0)
                     + (1.0 - t) * jnp.maximum(jnp.log(1.0 - p), -100.0)))
    inter = jnp.sum(p * t, axis=1)
    dice = (2.0 * inter + 1.0) / (jnp.sum(p, axis=1) + jnp.sum(t, axis=1) + 1.0)
    return bce + (1.0 - jnp.mean(dice))


if __name__ == "__main__":
    key = jax.random.PRNGKey(0)
    keys = jax.random.split(key, 8)

    def make(shape, kp, kt):
        pred = jax.nn.sigmoid(jax.random.normal(kp, shape, dtype=jnp.float32))
        target = (jax.random.uniform(kt, shape) > 0.5).astype(jnp.float32)
        return pred, target

    # 1) Spec-shaped case (B=2, C=4, H=W=16): single tile, no masking.
    pred, target = make((2, 4, 16, 16), keys[0], keys[1])
    loss = bce_dice_loss(pred, target)
    jax.block_until_ready(loss)
    ref = _reference(pred, target)
    assert jnp.allclose(loss, ref, rtol=1e-4, atol=1e-4), ("case1", loss, ref)

    # 2) Multi-chunk tile (ragged last chunk), single core-slice.
    pred, target = make((2, 153600), keys[2], keys[3])
    loss = bce_dice_loss(pred, target)
    ref = _reference(pred, target)
    assert jnp.allclose(loss, ref, rtol=1e-4, atol=1e-4), ("case2", loss, ref)

    # 3) Two core-slices, multiple reduction steps per core, masked tail tile.
    pred, target = make((2, 130048), keys[4], keys[5])
    loss = bce_dice_loss(pred, target, target_block_bytes=400 * 1024)
    ref = _reference(pred, target)
    assert jnp.allclose(loss, ref, rtol=1e-4, atol=1e-4), ("case3", loss, ref)

    # 4) Uneven core split (duplicated tile clamped in index_map + masked out).
    pred, target = make((2, 5120), keys[6], keys[7])
    loss = bce_dice_loss(pred, target, target_block_bytes=8 * 1024)
    ref = _reference(pred, target)
    assert jnp.allclose(loss, ref, rtol=1e-4, atol=1e-4), ("case4", loss, ref)

    print("KERNEL_OK")
</pallas_src>

<mosaic_0001>
module attributes {stable_mosaic.version = 11 : i64} {
  func.func @_bce_dice_kernel(%arg0: i32, %arg1: i32, %arg2: memref<2x8x128xf32, #tpu.memory_space<vmem>>, %arg3: memref<2x8x128xf32, #tpu.memory_space<vmem>>, %arg4: memref<1x4x16x128xf32, #tpu.memory_space<vmem>>, %arg5: memref<2x8x128xf32, #tpu.memory_space<vmem>>, %arg6: memref<2x8x128xf32, #tpu.memory_space<vmem>>, %arg7: memref<2x8x128xf32, #tpu.memory_space<vmem>>, %arg8: memref<2x8x128xf32, #tpu.memory_space<vmem>>) attributes {dimension_semantics = [#tpu.dimension_semantics<parallel>, #tpu.dimension_semantics<arbitrary>], iteration_bounds = array<i64: 1, 1>, scalar_prefetch = 0 : i64, scratch_operands = 4 : i64, tpu.core_type = #tpu.core_type<tc>, window_params = [{transform_indices = @transform_0, window_bounds = array<i64: 2, 8, 128>}, {transform_indices = @transform_1, window_bounds = array<i64: 2, 8, 128>}, {transform_indices = @transform_2, window_bounds = array<i64: 1, 4, 16, 128>}]} {
    %c0_i32 = arith.constant 0 : i32
    %0 = arith.cmpi eq, %arg1, %c0_i32 : i32
    %1 = arith.extui %0 : i1 to i32
    %c0_i32_0 = arith.constant 0 : i32
    %2 = arith.cmpi ne, %1, %c0_i32_0 : i32
    scf.if %2 {
      %cst_38 = arith.constant 0.000000e+00 : f32
      %40 = vector.broadcast %cst_38 : f32 to vector<2x8x128xf32>
      %c0_39 = arith.constant 0 : index
      %c0_40 = arith.constant 0 : index
      %c0_41 = arith.constant 0 : index
      %41 = vector.load %arg5[%c0_39, %c0_40, %c0_41] : memref<2x8x128xf32, #tpu.memory_space<vmem>>, vector<2x8x128xf32>
      tpu.vector_store %arg5[%c0_39, %c0_40, %c0_41], %40 {strides = array<i32>} : memref<2x8x128xf32, #tpu.memory_space<vmem>>, vector<2x8x128xf32>,
      %cst_42 = arith.constant 0.000000e+00 : f32
      %42 = vector.broadcast %cst_42 : f32 to vector<2x8x128xf32>
      %c0_43 = arith.constant 0 : index
      %c0_44 = arith.constant 0 : index
      %c0_45 = arith.constant 0 : index
      %43 = vector.load %arg6[%c0_43, %c0_44, %c0_45] : memref<2x8x128xf32, #tpu.memory_space<vmem>>, vector<2x8x128xf32>
      tpu.vector_store %arg6[%c0_43, %c0_44, %c0_45], %42 {strides = array<i32>} : memref<2x8x128xf32, #tpu.memory_space<vmem>>, vector<2x8x128xf32>,
      %cst_46 = arith.constant 0.000000e+00 : f32
      %44 = vector.broadcast %cst_46 : f32 to vector<2x8x128xf32>
      %c0_47 = arith.constant 0 : index
      %c0_48 = arith.constant 0 : index
      %c0_49 = arith.constant 0 : index
      %45 = vector.load %arg7[%c0_47, %c0_48, %c0_49] : memref<2x8x128xf32, #tpu.memory_space<vmem>>, vector<2x8x128xf32>
      tpu.vector_store %arg7[%c0_47, %c0_48, %c0_49], %44 {strides = array<i32>} : memref<2x8x128xf32, #tpu.memory_space<vmem>>, vector<2x8x128xf32>,
      %cst_50 = arith.constant 0.000000e+00 : f32
      %46 = vector.broadcast %cst_50 : f32 to vector<2x8x128xf32>
      %c0_51 = arith.constant 0 : index
      %c0_52 = arith.constant 0 : index
      %c0_53 = arith.constant 0 : index
      %47 = vector.load %arg8[%c0_51, %c0_52, %c0_53] : memref<2x8x128xf32, #tpu.memory_space<vmem>>, vector<2x8x128xf32>
      tpu.vector_store %arg8[%c0_51, %c0_52, %c0_53], %46 {strides = array<i32>} : memref<2x8x128xf32, #tpu.memory_space<vmem>>, vector<2x8x128xf32>,
    } else {
    }
    %c0 = arith.constant 0 : index
    %c0_1 = arith.constant 0 : index
    %c0_2 = arith.constant 0 : index
    %3 = vector.load %arg2[%c0, %c0_1, %c0_2] : memref<2x8x128xf32, #tpu.memory_space<vmem>>, vector<2x8x128xf32>
    %c0_3 = arith.constant 0 : index
    %c0_4 = arith.constant 0 : index
    %c0_5 = arith.constant 0 : index
    %4 = vector.load %arg3[%c0_3, %c0_4, %c0_5] : memref<2x8x128xf32, #tpu.memory_space<vmem>>, vector<2x8x128xf32>
    %5 = math.log %3 : vector<2x8x128xf32>
    %cst = arith.constant -1.000000e+02 : f32
    %6 = vector.broadcast %cst : f32 to vector<2x8x128xf32>
    %7 = arith.maximumf %5, %6 : vector<2x8x128xf32>
    %cst_6 = arith.constant 1.000000e+00 : f32
    %8 = vector.broadcast %cst_6 : f32 to vector<2x8x128xf32>
    %9 = arith.subf %8, %3 : vector<2x8x128xf32>
    %10 = math.log %9 : vector<2x8x128xf32>
    %cst_7 = arith.constant -1.000000e+02 : f32
    %11 = vector.broadcast %cst_7 : f32 to vector<2x8x128xf32>
    %12 = arith.maximumf %10, %11 : vector<2x8x128xf32>
    %13 = arith.subf %12, %7 : vector<2x8x128xf32>
    %14 = arith.mulf %4, %13 : vector<2x8x128xf32>
    %15 = arith.subf %14, %12 : vector<2x8x128xf32>
    %c0_8 = arith.constant 0 : index
    %c0_9 = arith.constant 0 : index
    %c0_10 = arith.constant 0 : index
    %16 = vector.load %arg5[%c0_8, %c0_9, %c0_10] : memref<2x8x128xf32, #tpu.memory_space<vmem>>, vector<2x8x128xf32>
    %17 = vector.shape_cast %15 : vector<2x8x128xf32> to vector<2x1x8x128xf32>
    %cst_11 = arith.constant dense<0.000000e+00> : vector<2x8x128xf32>
    %18 = vector.multi_reduction <add>, %17, %cst_11 [1] : vector<2x1x8x128xf32> to vector<2x8x128xf32>
    %19 = arith.addf %16, %18 : vector<2x8x128xf32>
    %c0_12 = arith.constant 0 : index
    %c0_13 = arith.constant 0 : index
    %c0_14 = arith.constant 0 : index
    %20 = vector.load %arg5[%c0_12, %c0_13, %c0_14] : memref<2x8x128xf32, #tpu.memory_space<vmem>>, vector<2x8x128xf32>
    tpu.vector_store %arg5[%c0_12, %c0_13, %c0_14], %19 {strides = array<i32>} : memref<2x8x128xf32, #tpu.memory_space<vmem>>, vector<2x8x128xf32>,
    %c0_15 = arith.constant 0 : index
    %c0_16 = arith.constant 0 : index
    %c0_17 = arith.constant 0 : index
    %21 = vector.load %arg6[%c0_15, %c0_16, %c0_17] : memref<2x8x128xf32, #tpu.memory_space<vmem>>, vector<2x8x128xf32>
    %22 = arith.mulf %3, %4 : vector<2x8x128xf32>
    %23 = vector.shape_cast %22 : vector<2x8x128xf32> to vector<2x1x8x128xf32>
    %cst_18 = arith.constant dense<0.000000e+00> : vector<2x8x128xf32>
    %24 = vector.multi_reduction <add>, %23, %cst_18 [1] : vector<2x1x8x128xf32> to vector<2x8x128xf32>
    %25 = arith.addf %21, %24 : vector<2x8x128xf32>
    %c0_19 = arith.constant 0 : index
    %c0_20 = arith.constant 0 : index
    %c0_21 = arith.constant 0 : index
    %26 = vector.load %arg6[%c0_19, %c0_20, %c0_21] : memref<2x8x128xf32, #tpu.memory_space<vmem>>, vector<2x8x128xf32>
    tpu.vector_store %arg6[%c0_19, %c0_20, %c0_21], %25 {strides = array<i32>} : memref<2x8x128xf32, #tpu.memory_space<vmem>>, vector<2x8x128xf32>,
    %c0_22 = arith.constant 0 : index
    %c0_23 = arith.constant 0 : index
    %c0_24 = arith.constant 0 : index
    %27 = vector.load %arg7[%c0_22, %c0_23, %c0_24] : memref<2x8x128xf32, #tpu.memory_space<vmem>>, vector<2x8x128xf32>
    %28 = vector.shape_cast %3 : vector<2x8x128xf32> to vector<2x1x8x128xf32>
    %cst_25 = arith.constant dense<0.000000e+00> : vector<2x8x128xf32>
    %29 = vector.multi_reduction <add>, %28, %cst_25 [1] : vector<2x1x8x128xf32> to vector<2x8x128xf32>
    %30 = arith.addf %27, %29 : vector<2x8x128xf32>
    %c0_26 = arith.constant 0 : index
    %c0_27 = arith.constant 0 : index
    %c0_28 = arith.constant 0 : index
    %31 = vector.load %arg7[%c0_26, %c0_27, %c0_28] : memref<2x8x128xf32, #tpu.memory_space<vmem>>, vector<2x8x128xf32>
    tpu.vector_store %arg7[%c0_26, %c0_27, %c0_28], %30 {strides = array<i32>} : memref<2x8x128xf32, #tpu.memory_space<vmem>>, vector<2x8x128xf32>,
    %c0_29 = arith.constant 0 : index
    %c0_30 = arith.constant 0 : index
    %c0_31 = arith.constant 0 : index
    %32 = vector.load %arg8[%c0_29, %c0_30, %c0_31] : memref<2x8x128xf32, #tpu.memory_space<vmem>>, vector<2x8x128xf32>
    %33 = vector.shape_cast %4 : vector<2x8x128xf32> to vector<2x1x8x128xf32>
    %cst_32 = arith.constant dense<0.000000e+00> : vector<2x8x128xf32>
    %34 = vector.multi_reduction <add>, %33, %cst_32 [1] : vector<2x1x8x128xf32> to vector<2x8x128xf32>
    %35 = arith.addf %32, %34 : vector<2x8x128xf32>
    %c0_33 = arith.constant 0 : index
    %c0_34 = arith.constant 0 : index
    %c0_35 = arith.constant 0 : index
    %36 = vector.load %arg8[%c0_33, %c0_34, %c0_35] : memref<2x8x128xf32, #tpu.memory_space<vmem>>, vector<2x8x128xf32>
    tpu.vector_store %arg8[%c0_33, %c0_34, %c0_35], %35 {strides = array<i32>} : memref<2x8x128xf32, #tpu.memory_space<vmem>>, vector<2x8x128xf32>,
    %c0_i32_36 = arith.constant 0 : i32
    %37 = arith.cmpi eq, %arg1, %c0_i32_36 : i32
    %38 = arith.extui %37 : i1 to i32
    %c0_i32_37 = arith.constant 0 : i32
    %39 = arith.cmpi ne, %38, %c0_i32_37 : i32
    scf.if %39 {
      %c0_38 = arith.constant 0 : index
      %c0_39 = arith.constant 0 : index
      %c0_40 = arith.constant 0 : index
      %40 = vector.load %arg5[%c0_38, %c0_39, %c0_40] : memref<2x8x128xf32, #tpu.memory_space<vmem>>, vector<2x8x128xf32>
      %41 = vector.shape_cast %40 : vector<2x8x128xf32> to vector<16x128xf32>
      %c0_41 = arith.constant 0 : index
      %c0_42 = arith.constant 0 : index
      %c0_43 = arith.constant 0 : index
      %c0_44 = arith.constant 0 : index
      %42 = vector.load %arg4[%c0_41, %c0_42, %c0_43, %c0_44] : memref<1x4x16x128xf32, #tpu.memory_space<vmem>>, vector<1x1x16x128xf32>
      %43 = vector.shape_cast %42 : vector<1x1x16x128xf32> to vector<16x128xf32>
      %44 = vector.shape_cast %41 : vector<16x128xf32> to vector<1x1x16x128xf32>
      tpu.vector_store %arg4[%c0_41, %c0_42, %c0_43, %c0_44], %44 {strides = array<i32>} : memref<1x4x16x128xf32, #tpu.memory_space<vmem>>, vector<1x1x16x128xf32>,
      %c0_45 = arith.constant 0 : index
      %c0_46 = arith.constant 0 : index
      %c0_47 = arith.constant 0 : index
      %45 = vector.load %arg6[%c0_45, %c0_46, %c0_47] : memref<2x8x128xf32, #tpu.memory_space<vmem>>, vector<2x8x128xf32>
      %46 = vector.shape_cast %45 : vector<2x8x128xf32> to vector<16x128xf32>
      %c0_48 = arith.constant 0 : index
      %c1 = arith.constant 1 : index
      %c0_49 = arith.constant 0 : index
      %c0_50 = arith.constant 0 : index
      %47 = vector.load %arg4[%c0_48, %c1, %c0_49, %c0_50] : memref<1x4x16x128xf32, #tpu.memory_space<vmem>>, vector<1x1x16x128xf32>
      %48 = vector.shape_cast %47 : vector<1x1x16x128xf32> to vector<16x128xf32>
      %49 = vector.shape_cast %46 : vector<16x128xf32> to vector<1x1x16x128xf32>
      tpu.vector_store %arg4[%c0_48, %c1, %c0_49, %c0_50], %49 {strides = array<i32>} : memref<1x4x16x128xf32, #tpu.memory_space<vmem>>, vector<1x1x16x128xf32>,
      %c0_51 = arith.constant 0 : index
      %c0_52 = arith.constant 0 : index
      %c0_53 = arith.constant 0 : index
      %50 = vector.load %arg7[%c0_51, %c0_52, %c0_53] : memref<2x8x128xf32, #tpu.memory_space<vmem>>, vector<2x8x128xf32>
      %51 = vector.shape_cast %50 : vector<2x8x128xf32> to vector<16x128xf32>
      %c0_54 = arith.constant 0 : index
      %c2 = arith.constant 2 : index
      %c0_55 = arith.constant 0 : index
      %c0_56 = arith.constant 0 : index
      %52 = vector.load %arg4[%c0_54, %c2, %c0_55, %c0_56] : memref<1x4x16x128xf32, #tpu.memory_space<vmem>>, vector<1x1x16x128xf32>
      %53 = vector.shape_cast %52 : vector<1x1x16x128xf32> to vector<16x128xf32>
      %54 = vector.shape_cast %51 : vector<16x128xf32> to vector<1x1x16x128xf32>
      tpu.vector_store %arg4[%c0_54, %c2, %c0_55, %c0_56], %54 {strides = array<i32>} : memref<1x4x16x128xf32, #tpu.memory_space<vmem>>, vector<1x1x16x128xf32>,
      %c0_57 = arith.constant 0 : index
      %c0_58 = arith.constant 0 : index
      %c0_59 = arith.constant 0 : index
      %55 = vector.load %arg8[%c0_57, %c0_58, %c0_59] : memref<2x8x128xf32, #tpu.memory_space<vmem>>, vector<2x8x128xf32>
      %56 = vector.shape_cast %55 : vector<2x8x128xf32> to vector<16x128xf32>
      %c0_60 = arith.constant 0 : index
      %c3 = arith.constant 3 : index
      %c0_61 = arith.constant 0 : index
      %c0_62 = arith.constant 0 : index
      %57 = vector.load %arg4[%c0_60, %c3, %c0_61, %c0_62] : memref<1x4x16x128xf32, #tpu.memory_space<vmem>>, vector<1x1x16x128xf32>
      %58 = vector.shape_cast %57 : vector<1x1x16x128xf32> to vector<16x128xf32>
      %59 = vector.shape_cast %56 : vector<16x128xf32> to vector<1x1x16x128xf32>
      tpu.vector_store %arg4[%c0_60, %c3, %c0_61, %c0_62], %59 {strides = array<i32>} : memref<1x4x16x128xf32, #tpu.memory_space<vmem>>, vector<1x1x16x128xf32>,
    } else {
    }
    return
  }
  func.func @transform_0(%arg0: i32, %arg1: i32) -> (i32, i32, i32) {
    %c1_i32 = arith.constant 1 : i32
    %0 = arith.muli %arg0, %c1_i32 : i32
    %1 = arith.addi %0, %arg1 : i32
    %c0_i32 = arith.constant 0 : i32
    %c0_i32_0 = arith.constant 0 : i32
    %c0_i32_1 = arith.constant 0 : i32
    return %c0_i32, %1, %c0_i32_0 : i32, i32, i32
  }
  func.func @transform_1(%arg0: i32, %arg1: i32) -> (i32, i32, i32) {
    %c1_i32 = arith.constant 1 : i32
    %0 = arith.muli %arg0, %c1_i32 : i32
    %1 = arith.addi %0, %arg1 : i32
    %c0_i32 = arith.constant 0 : i32
    %c0_i32_0 = arith.constant 0 : i32
    %c0_i32_1 = arith.constant 0 : i32
    return %c0_i32, %1, %c0_i32_0 : i32, i32, i32
  }
  func.func @transform_2(%arg0: i32, %arg1: i32) -> (i32, i32, i32, i32) {
    %c0_i32 = arith.constant 0 : i32
    %c0_i32_0 = arith.constant 0 : i32
    %c0_i32_1 = arith.constant 0 : i32
    %c0_i32_2 = arith.constant 0 : i32
    return %arg0, %c0_i32, %c0_i32_0, %c0_i32_1 : i32, i32, i32, i32
  }
}

</mosaic_0001>

<llo_original>
// kernel: tpu_custom_call.1
$region0: #{tpu_custom_call.1}
  #allocation0 [shape = 'u32[]', space=smem, size = 0x4, offset = 0x4, fixed_abs, tag = 'smem constant byte address 0x4 - core index']
  #allocation1 [shape = 'u32[144,128]{1,0:T(1,128)}', space=vmem, size = 0x12000, scoped, tag = 'internal scratch']
  #allocation2 [shape = 'f32[2,8,128]{2,1,0:T(8,128)}', space=vmem, size = 0x2000, scoped, tag = 'scratch operand']
  #allocation3 [shape = 'f32[2,8,128]{2,1,0:T(8,128)}', space=vmem, size = 0x2000, scoped, tag = 'scratch operand']
  #allocation4 [shape = 'f32[2,8,128]{2,1,0:T(8,128)}', space=vmem, size = 0x2000, scoped, tag = 'scratch operand']
  #allocation5 [shape = 'f32[2,8,128]{2,1,0:T(8,128)}', space=vmem, size = 0x2000, scoped, tag = 'scratch operand']
  %s0 = inlined_call_operand.hbm [shape: f32[2,8,128], index: 0, kind: input, shape index: {}]
  %s1 = inlined_call_operand.hbm [shape: f32[2,8,128], index: 1, kind: input, shape index: {}]
  %s2 = inlined_call_operand.hbm [shape: f32[1,4,16,128], index: 2, kind: output, shape index: {}]
  %s3 = sld [smem:[#allocation0]]
  $region34: #{tpu_custom_call.1} parent=0
    _
  %s5 = ssub.s32 1, %s3
  %s6 = scalar_select 0, %s5, %s3
  $region1: #{tpu_custom_call.1} parent=0
    #allocation6 [shape = 'u8[8192]{0}', space=vmem, size = 0x2000, scoped, tag = 'input window, operand 0, single buffered']
    #allocation7 [shape = 's32[1]{0}', space=sflag, size = 0x4, scoped, tag = 'scoped memory for tpu_custom_call.1']
    #allocation8 [shape = 's32[1]{0}', space=sflag, size = 0x4, scoped, tag = 'scoped memory for tpu_custom_call.1']
    #allocation9 [shape = 'u8[8192]{0}', space=vmem, size = 0x2000, scoped, tag = 'input window, operand 1, single buffered']
    #allocation10 [shape = 's32[1]{0}', space=sflag, size = 0x4, scoped, tag = 'scoped memory for tpu_custom_call.1']
    #allocation11 [shape = 'u8[32768]{0}', space=vmem, size = 0x8000, scoped, tag = 'output window, operand 0, single buffered']
    %7 = vsyncpa [#allocation7], 0
    %8 = vsyncpa [#allocation10], 0
    %9 = vsyncpa [#allocation8], 0
    // Predicated region
    $region2: #{tpu_custom_call.1} parent=1 // pred_check
      _
    $region3: #{tpu_custom_call.1} parent=1 // pred_check_branch
      %11 = sbr.rel (0) target = $region5
    $region4: #{tpu_custom_call.1} parent=1 // pred_region
      %s12 = sadd.s32 0, 0
      %s14 = ssub.s32 256, 256
      %15 = vsyncadd [#allocation7], %s14
      %s16 = smul.addr %s12, 128
      %s17 = scalar_lea.hbm %s0, %s16
      %s18 = sshll.u32 [#allocation6], 4
      %s19 = int_to_ptr.vmem [resolvable:$true] %s18
      %24 = dma.hbm_to_vmem [thread:$0]  %s17, 256, %s19, [#allocation7], 128, 128, 8
    $region5: #{tpu_custom_call.1} parent=1 // pred_fallthru
      _
    // Predicated region
    $region6: #{tpu_custom_call.1} parent=1 // pred_check
      _
    $region7: #{tpu_custom_call.1} parent=1 // pred_check_branch
      %26 = sbr.rel (0) target = $region9
    $region8: #{tpu_custom_call.1} parent=1 // pred_region
      %s27 = sadd.s32 0, 0
      %s29 = ssub.s32 256, 256
      %30 = vsyncadd [#allocation10], %s29
      %s31 = smul.addr %s27, 128
      %s32 = scalar_lea.hbm %s1, %s31
      %s33 = sshll.u32 [#allocation9], 4
      %s34 = int_to_ptr.vmem [resolvable:$true] %s33
      %39 = dma.hbm_to_vmem [thread:$0]  %s32, 256, %s34, [#allocation10], 128, 128, 8
    $region9: #{tpu_custom_call.1} parent=1 // pred_fallthru
      _
    // Predicated region
    $region10: #{tpu_custom_call.1} parent=1 // pred_check
      _
    $region11: #{tpu_custom_call.1} parent=1 // pred_check_branch
      %41 = sbr.rel (0) target = $region13
    $region12: #{tpu_custom_call.1} parent=1 // pred_region
      %42 = dma.done [#allocation7], 256
    $region13: #{tpu_custom_call.1} parent=1 // pred_fallthru
      _
    // Predicated region
    $region14: #{tpu_custom_call.1} parent=1 // pred_check
      _
    $region15: #{tpu_custom_call.1} parent=1 // pred_check_branch
      %44 = sbr.rel (0) target = $region17
    $region16: #{tpu_custom_call.1} parent=1 // pred_region
      %45 = dma.done [#allocation10], 256
    $region17: #{tpu_custom_call.1} parent=1 // pred_fallthru
      _
    %s46 = sadd.s32 0, 0
    %s47 = sadd.s32 0, 0
    %p48 = scmp.eq.s32.totalorder 0, 0
    // Predicated region
    $region18: #{tpu_custom_call.1} parent=1 // pred_check
      %p49 = pneg %p48
    $region19: #{tpu_custom_call.1} parent=1 // pred_check_branch
      %51 = sbr.rel (%p49) target = $region21
    $region20: #{tpu_custom_call.1} parent=1 // pred_region
      %52 = vst [vmem:[#allocation2] sm:$0xff] 0.0
      %53 = vst [vmem:[#allocation2 + $0x8] sm:$0xff] 0.0
      %54 = vst [vmem:[#allocation3] sm:$0xff] 0.0
      %55 = vst [vmem:[#allocation3 + $0x8] sm:$0xff] 0.0
      %56 = vst [vmem:[#allocation4] sm:$0xff] 0.0
      %57 = vst [vmem:[#allocation4 + $0x8] sm:$0xff] 0.0
      %58 = vst [vmem:[#allocation5] sm:$0xff] 0.0
      %59 = vst [vmem:[#allocation5 + $0x8] sm:$0xff] 0.0
    $region21: #{tpu_custom_call.1} parent=1 // pred_fallthru
      _
    %v60 = vld [vmem:[#allocation6] sm:$0xff]
    %v61 = vld [vmem:[#allocation6 + $0x8] sm:$0xff]
    %v62 = vld [vmem:[#allocation9] sm:$0xff]
    %v63 = vld [vmem:[#allocation9 + $0x8] sm:$0xff]
    %v64 = vlog2.pop %v60
    %v65 = vmul.f32 %v64, 0.6931472
    %v66 = vlog2.pop %v61
    %v67 = vmul.f32 %v66, 0.6931472
    %v68 = vmax.f32 %v65, -100.0
    %v69 = vmax.f32 %v67, -100.0
    %v70 = vsub.f32 1.0, %v60
    %v71 = vsub.f32 1.0, %v61
    %v72 = vlog2.pop %v70
    %v73 = vmul.f32 %v72, 0.6931472
    %v74 = vlog2.pop %v71
    %v75 = vmul.f32 %v74, 0.6931472
    %v76 = vmax.f32 %v73, -100.0
    %v77 = vmax.f32 %v75, -100.0
    %v78 = vsub.f32 %v76, %v68
    %v79 = vsub.f32 %v77, %v69
    %v80 = vmul.f32 %v62, %v78
    %v81 = vmul.f32 %v63, %v79
    %v82 = vsub.f32 %v80, %v76
    %v83 = vsub.f32 %v81, %v77
    %v84 = vld [vmem:[#allocation2] sm:$0xff]
    %v85 = vld [vmem:[#allocation2 + $0x8] sm:$0xff]
    %v86 = vadd.f32 %v82, 0.0
    %v87 = vadd.f32 %v83, 0.0
    %v88 = vadd.f32 %v84, %v86
    %v89 = vadd.f32 %v85, %v87
    %90 = vst [vmem:[#allocation2] sm:$0xff] %v88
    %91 = vst [vmem:[#allocation2 + $0x8] sm:$0xff] %v89
    %v92 = vld [vmem:[#allocation3] sm:$0xff]
    %v93 = vld [vmem:[#allocation3 + $0x8] sm:$0xff]
    %v94 = vmul.f32 %v60, %v62
    %v95 = vmul.f32 %v61, %v63
    %v96 = vadd.f32 %v94, 0.0
    %v97 = vadd.f32 %v95, 0.0
    %v98 = vadd.f32 %v92, %v96
    %v99 = vadd.f32 %v93, %v97
    %100 = vst [vmem:[#allocation3] sm:$0xff] %v98
    %101 = vst [vmem:[#allocation3 + $0x8] sm:$0xff] %v99
    %v102 = vld [vmem:[#allocation4] sm:$0xff]
    %v103 = vld [vmem:[#allocation4 + $0x8] sm:$0xff]
    %v104 = vadd.f32 %v60, 0.0
    %v105 = vadd.f32 %v61, 0.0
    %v106 = vadd.f32 %v102, %v104
    %v107 = vadd.f32 %v103, %v105
    %108 = vst [vmem:[#allocation4] sm:$0xff] %v106
    %109 = vst [vmem:[#allocation4 + $0x8] sm:$0xff] %v107
    %v110 = vld [vmem:[#allocation5] sm:$0xff]
    %v111 = vld [vmem:[#allocation5 + $0x8] sm:$0xff]
    %v112 = vadd.f32 %v62, 0.0
    %v113 = vadd.f32 %v63, 0.0
    %v114 = vadd.f32 %v110, %v112
    %v115 = vadd.f32 %v111, %v113
    %116 = vst [vmem:[#allocation5] sm:$0xff] %v114
    %117 = vst [vmem:[#allocation5 + $0x8] sm:$0xff] %v115
    // Predicated region
    $region22: #{tpu_custom_call.1} parent=1 // pred_check
      %p118 = pneg %p48
    $region23: #{tpu_custom_call.1} parent=1 // pred_check_branch
      %120 = sbr.rel (%p118) target = $region25
    $region24: #{tpu_custom_call.1} parent=1 // pred_region
      %v121 = vld [vmem:[#allocation2] sm:$0xff]
      %v122 = vld [vmem:[#allocation2 + $0x8] sm:$0xff]
      %123 = vst [vmem:[#allocation11] sm:$0xff] %v121
      %124 = vst [vmem:[#allocation11 + $0x8] sm:$0xff] %v122
      %v125 = vld [vmem:[#allocation3] sm:$0xff]
      %v126 = vld [vmem:[#allocation3 + $0x8] sm:$0xff]
      %s127 = scalar_lea.vmem [#allocation11], 16
      %128 = vst [vmem:[%s127] sm:$0xff] %v125
      %129 = vst [vmem:[%s127 + $0x8] sm:$0xff] %v126
      %v130 = vld [vmem:[#allocation4] sm:$0xff]
      %v131 = vld [vmem:[#allocation4 + $0x8] sm:$0xff]
      %s132 = scalar_lea.vmem [#allocation11], 32
      %133 = vst [vmem:[%s132] sm:$0xff] %v130
      %134 = vst [vmem:[%s132 + $0x8] sm:$0xff] %v131
      %v135 = vld [vmem:[#allocation5] sm:$0xff]
      %v136 = vld [vmem:[#allocation5 + $0x8] sm:$0xff]
      %s137 = scalar_lea.vmem [#allocation11], 48
      %138 = vst [vmem:[%s137] sm:$0xff] %v135
      %139 = vst [vmem:[%s137 + $0x8] sm:$0xff] %v136
    $region25: #{tpu_custom_call.1} parent=1 // pred_fallthru
      _
    // Predicated region
    $region26: #{tpu_custom_call.1} parent=1 // pred_check
      _
    $region27: #{tpu_custom_call.1} parent=1 // pred_check_branch
      %141 = sbr.rel (0) target = $region29
    $region28: #{tpu_custom_call.1} parent=1 // pred_region
      %s143 = ssub.s32 1024, 1024
      %144 = vsyncadd [#allocation8], %s143
      %s145 = sshll.u32 [#allocation11], 4
      %s146 = int_to_ptr.vmem [resolvable:$true] %s145
      %151 = dma.vmem_to_hbm [thread:$0]  %s146, 1024, %s2, [#allocation8], 128, 128, 8
    $region29: #{tpu_custom_call.1} parent=1 // pred_fallthru
      _
    // Predicated region
    $region30: #{tpu_custom_call.1} parent=1 // pred_check
      _
    $region31: #{tpu_custom_call.1} parent=1 // pred_check_branch
      %153 = sbr.rel (0) target = $region33
    $region32: #{tpu_custom_call.1} parent=1 // pred_region
      %154 = dma.done [#allocation8], 1024
    $region33: #{tpu_custom_call.1} parent=1 // pred_fallthru
      _
    %155 = vsyncpa [#allocation7], 1
    %156 = vsyncpa [#allocation10], 1
    %157 = vsyncpa [#allocation8], 1

</llo_original>
